<compile_context>
chip_gen: v7x
topology: tpu7x:2x2x1
jax: 0.10.0
libtpu: 0.0.40
codegen_flags: <defaults>
</compile_context>

<pallas_src>
import jax
import jax.numpy as jnp
from jax.experimental import pallas as pl
from jax.experimental.pallas import tpu as pltpu

_SQRT_HALF = 0.7071067811865476


def _apply_act(x, act):
    """Activation(func) from the reference module (eval mode), f32 math."""
    if act is None:
        return x
    if act == "relu":
        return jnp.maximum(x, 0.0)
    if act == "gelu":  # exact erf-based GELU == torch.nn.GELU() default
        return 0.5 * x * (1.0 + jax.lax.erf(x * _SQRT_HALF))
    if act == "elu":
        return jnp.where(x > 0.0, x, jnp.expm1(x))
    if act == "softplus":
        return jnp.logaddexp(x, 0.0)
    if act == "exp":
        return jnp.exp(x)
    # TODO(synk): 'gelu_enformer' uses a custom GELU class whose body is not in
    # the provided spec, so it is not implemented here.
    raise NotImplementedError(f"Unsupported activation: {act}")


def _pick_tile(total, target, align):
    """Largest divisor of `total` that is <= target, preferring align-multiples."""
    if total <= target:
        return total
    t = (target // align) * align
    while t >= align:
        if total % t == 0:
            return t
        t -= align
    for t in range(min(target, total), 0, -1):
        if total % t == 0:
            return t
    return total


# ------------------------------ fused kernel --------------------------------

def _make_conv_head_kernel(act, pool, has_conv, NB, L_total, mxu_dtype):
    pooled = pool in ("avg", "max")

    def kernel(*refs):
        refs = list(refs)
        x_ref = refs.pop(0)                                   # (NB, Cin, TL)
        w_ref = refs.pop(0) if has_conv else None             # (Cout, Cin)
        s_ref = None if has_conv else refs.pop(0)             # (Cout, 1)
        h_ref = refs.pop(0)                                   # (Cout, 1)
        o_ref = refs.pop(0)
        acc_ref = refs.pop(0) if pooled else None             # (NB, Cout) f32

        l = pl.program_id(1)
        last_l = pl.num_programs(1) - 1

        if pooled:
            @pl.when(l == 0)
            def _():
                if pool == "avg":
                    acc_ref[...] = jnp.zeros_like(acc_ref)
                else:                                          # max-pool: -inf init
                    acc_ref[...] = jnp.full_like(acc_ref, -jnp.inf)

        shift = h_ref[...]                                     # f32 (Cout, 1)

        if has_conv:
            w = w_ref[...]                                     # bf16 (scale pre-folded)
            partial = []
            for b in range(NB):                                # NB small & static
                # cast to bf16 on the VPU right before the dot -> full-rate MXU,
                # f32 accumulation via preferred_element_type.
                xb = x_ref[b].astype(mxu_dtype)                # (Cin, TL), L on lanes
                y = jnp.dot(w, xb, preferred_element_type=jnp.float32)  # (Cout, TL)
                y = _apply_act(y + shift, act)                 # f32 epilogue
                if pooled:
                    red = (jnp.sum(y, axis=-1) if pool == "avg"
                           else jnp.max(y, axis=-1))           # (Cout,)
                    partial.append(red)
                else:
                    o_ref[b] = y.astype(o_ref.dtype)
            if pooled:
                tile = jnp.stack(partial, axis=0)              # (NB, Cout)
        else:
            # ChannelTransform == Identity; keep math in f32 (v5e VPU/EUP).
            y = x_ref[...].astype(jnp.float32)                 # (NB, Cout, TL)
            y = _apply_act(y * s_ref[...] + shift, act)
            if pooled:
                tile = (jnp.sum(y, axis=-1) if pool == "avg"
                        else jnp.max(y, axis=-1))              # (NB, Cout)
            else:
                o_ref[...] = y.astype(o_ref.dtype)

        if pooled:
            if pool == "avg":
                acc_ref[...] += tile
            else:
                acc_ref[...] = jnp.maximum(acc_ref[...], tile)

            @pl.when(l == last_l)
            def _():
                res = acc_ref[...]
                if pool == "avg":
                    res = res * (1.0 / L_total)                # divide by FULL L
                o_ref[...] = res.astype(o_ref.dtype)

    return kernel


# ------------------------------- wrapper -------------------------------------

def conv_head_forward(x, params, *, act_func=None, pool_func=None, norm=False,
                      bn_eps=1e-5, mxu_dtype=jnp.bfloat16,
                      max_batch_tile=8, max_seq_tile=512):
    """Fused ConvHead forward.

    x:      (N, C_in, L) — PyTorch NCL layout, channels-first in-kernel.
    params: {"w": (n_tasks, C_in) or None, "b": (n_tasks,) or None,
             "bn": {gamma, beta, mean, var}} (bn only needed if norm=True).
    mxu_dtype: dtype fed to the MXU (default bf16, f32 accumulation).
    """
    N, Cin, L = x.shape
    has_conv = params.get("w") is not None
    Cout = params["w"].shape[0] if has_conv else Cin
    pooled = pool_func in ("avg", "max")

    NB = _pick_tile(N, max_batch_tile, 8)     # batch rows per grid step
    TL = _pick_tile(L, max_seq_tile, 128)     # L tile (128-multiple divisor)

    # ---- host-side fold: conv bias + eval BatchNorm -> per-channel affine.
    scale = jnp.ones((Cout,), jnp.float32)
    shift = jnp.zeros((Cout,), jnp.float32)
    if has_conv:
        shift = params["b"].astype(jnp.float32)
    if norm:
        bn = params["bn"]
        s = bn["gamma"].astype(jnp.float32) * jax.lax.rsqrt(
            bn["var"].astype(jnp.float32) + bn_eps)
        shift = s * shift + (bn["beta"].astype(jnp.float32)
                             - bn["mean"].astype(jnp.float32) * s)
        scale = s

    in_specs = [pl.BlockSpec((NB, Cin, TL), lambda n, l: (n, 0, l))]
    args = [x]                                 # keep HBM dtype; cast in-kernel
    if has_conv:
        # fold the scale into the (tiny) weights -> epilogue is just `y + shift`
        w = (scale[:, None] * params["w"].astype(jnp.float32)).astype(mxu_dtype)
        in_specs.append(pl.BlockSpec((Cout, Cin), lambda n, l: (0, 0)))
        args.append(w)
    else:
        in_specs.append(pl.BlockSpec((Cout, 1), lambda n, l: (0, 0)))
        args.append(scale.reshape(Cout, 1))
    in_specs.append(pl.BlockSpec((Cout, 1), lambda n, l: (0, 0)))
    args.append(shift.reshape(Cout, 1))

    if pooled:
        # lane-dense pooled output (N, Cout); reshape to (N, Cout, 1) below.
        out_shape = jax.ShapeDtypeStruct((N, Cout), x.dtype)
        out_spec = pl.BlockSpec((NB, Cout), lambda n, l: (n, 0))
        scratch = [pltpu.VMEM((NB, Cout), jnp.float32)]
    else:
        out_shape = jax.ShapeDtypeStruct((N, Cout, L), x.dtype)
        out_spec = pl.BlockSpec((NB, Cout, TL), lambda n, l: (n, 0, l))
        scratch = []

    kernel = _make_conv_head_kernel(act_func, pool_func, has_conv, NB, L, mxu_dtype)

    out = pl.pallas_call(
        kernel,
        out_shape=out_shape,
        grid=(N // NB, L // TL),               # L last (reduction / streaming)
        in_specs=in_specs,
        out_specs=out_spec,
        scratch_shapes=scratch,
        compiler_params=pltpu.CompilerParams(
            dimension_semantics=("parallel", "arbitrary")),
    )(*args)

    if pooled:
        out = out.reshape(N, Cout, 1)          # match torch AdaptiveXPool1d(1)
    return out


# --------------------------- pure-JAX reference ------------------------------

def conv_head_ref(x, params, *, act_func=None, pool_func=None, norm=False,
                  bn_eps=1e-5):
    y = x.astype(jnp.float32)
    if params.get("w") is not None:
        y = jnp.einsum("oc,ncl->nol", params["w"], y,
                       precision=jax.lax.Precision.HIGHEST)
        y = y + params["b"][None, :, None]
    if norm:
        bn = params["bn"]
        y = (y - bn["mean"][None, :, None]) * jax.lax.rsqrt(
            bn["var"][None, :, None] + bn_eps)
        y = y * bn["gamma"][None, :, None] + bn["beta"][None, :, None]
    y = _apply_act(y, act_func)
    if pool_func == "avg":
        y = jnp.mean(y, axis=-1, keepdims=True)
    elif pool_func == "max":
        y = jnp.max(y, axis=-1, keepdims=True)
    return y


# ---------------------------- parameter setup --------------------------------

def init_conv_head_params(key, in_channels, n_tasks, *, norm=False,
                          identity_conv=False):
    ks = jax.random.split(key, 6)
    p = {"w": None, "b": None}
    if not identity_conv:  # ChannelTransform is nn.Identity when Cin == n_tasks
        p["w"] = jax.random.normal(ks[0], (n_tasks, in_channels),
                                   jnp.float32) / jnp.sqrt(in_channels)
        p["b"] = 0.1 * jax.random.normal(ks[1], (n_tasks,), jnp.float32)
    if norm:  # deterministic eval-mode BatchNorm1d stats
        p["bn"] = dict(
            gamma=1.0 + 0.1 * jax.random.normal(ks[2], (n_tasks,), jnp.float32),
            beta=0.1 * jax.random.normal(ks[3], (n_tasks,), jnp.float32),
            mean=0.1 * jax.random.normal(ks[4], (n_tasks,), jnp.float32),
            var=1.0 + 0.1 * jnp.abs(jax.random.normal(ks[5], (n_tasks,),
                                                      jnp.float32)),
        )
    return p


# ----------------------------------- main -------------------------------------

if __name__ == "__main__":
    key = jax.random.PRNGKey(0)
    k_x, k_p1, k_p2, k_p3, k_x2, k_p4 = jax.random.split(key, 6)

    # Small shapes; L=256 with max_seq_tile=128 forces 2 L-tiles so the
    # streaming / pool-accumulator path is actually exercised.
    N, Cin, L, n_tasks = 2, 16, 256, 3
    x = jax.random.normal(k_x, (N, Cin, L), jnp.float32)

    configs = [
        dict(act_func=None,   pool_func=None,  norm=False),   # ConvHead defaults
        dict(act_func="relu", pool_func="avg", norm=True),
        dict(act_func="gelu", pool_func="max", norm=False),
    ]
    for kp, cfg in zip((k_p1, k_p2, k_p3), configs):
        params = init_conv_head_params(kp, Cin, n_tasks, norm=cfg["norm"])
        out = jax.block_until_ready(
            conv_head_forward(x, params, max_seq_tile=128, **cfg))
        ref = conv_head_ref(x, params, **cfg)
        exp_L = 1 if cfg["pool_func"] in ("avg", "max") else L
        assert out.shape == (N, n_tasks, exp_L), (out.shape, cfg)
        assert bool(jnp.all(jnp.isfinite(out))), cfg
        # tolerance covers the bf16 MXU path (f32 accumulation)
        assert bool(jnp.allclose(out, ref, rtol=2e-2, atol=2e-2)), cfg

    # f32 MXU path also works (default is bf16).
    params = init_conv_head_params(k_p1, Cin, n_tasks, norm=False)
    cfg = dict(act_func="relu", pool_func="avg", norm=False)
    out = jax.block_until_ready(conv_head_forward(
        x, params, mxu_dtype=jnp.float32, max_seq_tile=128, **cfg))
    ref = conv_head_ref(x, params, **cfg)
    assert bool(jnp.allclose(out, ref, rtol=1e-2, atol=1e-2))

    # Identity ChannelTransform path: in_channels == n_tasks -> conv is skipped.
    x2 = jax.random.normal(k_x2, (N, n_tasks, L), jnp.float32)
    params2 = init_conv_head_params(k_p4, n_tasks, n_tasks, norm=True,
                                    identity_conv=True)
    cfg2 = dict(act_func="relu", pool_func="avg", norm=True)
    out2 = jax.block_until_ready(
        conv_head_forward(x2, params2, max_seq_tile=128, **cfg2))
    ref2 = conv_head_ref(x2, params2, **cfg2)
    assert out2.shape == (N, n_tasks, 1), out2.shape
    assert bool(jnp.all(jnp.isfinite(out2)))
    assert bool(jnp.allclose(out2, ref2, rtol=1e-2, atol=1e-2))

    print("KERNEL_OK")
</pallas_src>

<mosaic_0001>
module attributes {stable_mosaic.version = 11 : i64} {
  func.func @kernel(%arg0: i32, %arg1: i32, %arg2: memref<2x16x128xf32, #tpu.memory_space<vmem>>, %arg3: memref<3x16xbf16, #tpu.memory_space<vmem>>, %arg4: memref<3x1xf32, #tpu.memory_space<vmem>>, %arg5: memref<2x3x128xf32, #tpu.memory_space<vmem>>) attributes {dimension_semantics = [#tpu.dimension_semantics<parallel>, #tpu.dimension_semantics<arbitrary>], iteration_bounds = array<i64: 1, 2>, scalar_prefetch = 0 : i64, scratch_operands = 0 : i64, tpu.core_type = #tpu.core_type<tc>, window_params = [{transform_indices = @transform_0, window_bounds = array<i64: 2, 16, 128>}, {pipeline_mode = #tpu.pipeline_mode<synchronous>, transform_indices = @transform_1, window_bounds = array<i64: 3, 16>}, {pipeline_mode = #tpu.pipeline_mode<synchronous>, transform_indices = @transform_2, window_bounds = array<i64: 3, 1>}, {transform_indices = @transform_3, window_bounds = array<i64: 2, 3, 128>}]} {
    %c0 = arith.constant 0 : index
    %c0_0 = arith.constant 0 : index
    %0 = vector.load %arg4[%c0, %c0_0] : memref<3x1xf32, #tpu.memory_space<vmem>>, vector<3x1xf32>
    %c0_1 = arith.constant 0 : index
    %c0_2 = arith.constant 0 : index
    %1 = vector.load %arg3[%c0_1, %c0_2] : memref<3x16xbf16, #tpu.memory_space<vmem>>, vector<3x16xbf16>
    %c0_3 = arith.constant 0 : index
    %c0_4 = arith.constant 0 : index
    %c0_5 = arith.constant 0 : index
    %2 = vector.load %arg2[%c0_3, %c0_4, %c0_5] : memref<2x16x128xf32, #tpu.memory_space<vmem>>, vector<1x16x128xf32>
    %3 = vector.shape_cast %2 : vector<1x16x128xf32> to vector<16x128xf32>
    %4 = arith.truncf %3 : vector<16x128xf32> to vector<16x128xbf16>
    %cst = arith.constant dense<0.000000e+00> : vector<3x128xf32>
    %5 = tpu.matmul %1, %4, %cst {dimension_numbers = #tpu.dot_dimension_numbers<[1], [0], [0], [1], [0, 0, 1, 1], [], []>} : vector<3x16xbf16>, vector<16x128xbf16>, vector<3x128xf32> -> vector<3x128xf32>
    %6 = vector.broadcast %0 : vector<3x1xf32> to vector<3x128xf32>
    %7 = arith.addf %5, %6 : vector<3x128xf32>
    %c0_6 = arith.constant 0 : index
    %c0_7 = arith.constant 0 : index
    %c0_8 = arith.constant 0 : index
    %8 = vector.load %arg5[%c0_6, %c0_7, %c0_8] : memref<2x3x128xf32, #tpu.memory_space<vmem>>, vector<1x3x128xf32>
    %9 = vector.shape_cast %8 : vector<1x3x128xf32> to vector<3x128xf32>
    %10 = vector.shape_cast %7 : vector<3x128xf32> to vector<1x3x128xf32>
    tpu.vector_store %arg5[%c0_6, %c0_7, %c0_8], %10 {strides = array<i32>} : memref<2x3x128xf32, #tpu.memory_space<vmem>>, vector<1x3x128xf32>,
    %c1 = arith.constant 1 : index
    %c0_9 = arith.constant 0 : index
    %c0_10 = arith.constant 0 : index
    %11 = vector.load %arg2[%c1, %c0_9, %c0_10] : memref<2x16x128xf32, #tpu.memory_space<vmem>>, vector<1x16x128xf32>
    %12 = vector.shape_cast %11 : vector<1x16x128xf32> to vector<16x128xf32>
    %13 = arith.truncf %12 : vector<16x128xf32> to vector<16x128xbf16>
    %cst_11 = arith.constant dense<0.000000e+00> : vector<3x128xf32>
    %14 = tpu.matmul %1, %13, %cst_11 {dimension_numbers = #tpu.dot_dimension_numbers<[1], [0], [0], [1], [0, 0, 1, 1], [], []>} : vector<3x16xbf16>, vector<16x128xbf16>, vector<3x128xf32> -> vector<3x128xf32>
    %15 = vector.broadcast %0 : vector<3x1xf32> to vector<3x128xf32>
    %16 = arith.addf %14, %15 : vector<3x128xf32>
    %c1_12 = arith.constant 1 : index
    %c0_13 = arith.constant 0 : index
    %c0_14 = arith.constant 0 : index
    %17 = vector.load %arg5[%c1_12, %c0_13, %c0_14] : memref<2x3x128xf32, #tpu.memory_space<vmem>>, vector<1x3x128xf32>
    %18 = vector.shape_cast %17 : vector<1x3x128xf32> to vector<3x128xf32>
    %19 = vector.shape_cast %16 : vector<3x128xf32> to vector<1x3x128xf32>
    tpu.vector_store %arg5[%c1_12, %c0_13, %c0_14], %19 {strides = array<i32>} : memref<2x3x128xf32, #tpu.memory_space<vmem>>, vector<1x3x128xf32>,
    return
  }
  func.func @transform_0(%arg0: i32, %arg1: i32) -> (i32, i32, i32) {
    %c0_i32 = arith.constant 0 : i32
    %c0_i32_0 = arith.constant 0 : i32
    return %arg0, %c0_i32, %arg1 : i32, i32, i32
  }
  func.func @transform_1(%arg0: i32, %arg1: i32) -> (i32, i32) {
    %c0_i32 = arith.constant 0 : i32
    %c0_i32_0 = arith.constant 0 : i32
    %c0_i32_1 = arith.constant 0 : i32
    return %c0_i32, %c0_i32_0 : i32, i32
  }
  func.func @transform_2(%arg0: i32, %arg1: i32) -> (i32, i32) {
    %c0_i32 = arith.constant 0 : i32
    %c0_i32_0 = arith.constant 0 : i32
    %c0_i32_1 = arith.constant 0 : i32
    return %c0_i32, %c0_i32_0 : i32, i32
  }
  func.func @transform_3(%arg0: i32, %arg1: i32) -> (i32, i32, i32) {
    %c0_i32 = arith.constant 0 : i32
    %c0_i32_0 = arith.constant 0 : i32
    return %arg0, %c0_i32, %arg1 : i32, i32, i32
  }
}

</mosaic_0001>

<llo_original>
// kernel: tpu_custom_call.1
$region0: #{tpu_custom_call.1}
  #allocation0 [shape = 'u32[]', space=smem, size = 0x4, offset = 0x4, fixed_abs, tag = 'smem constant byte address 0x4 - core index']
  #allocation1 [shape = 'u32[144,128]{1,0:T(1,128)}', space=vmem, size = 0x12000, scoped, tag = 'internal scratch']
  %s0 = inlined_call_operand.hbm [shape: f32[2,16,256], index: 0, kind: input, shape index: {}]
  %s1 = inlined_call_operand.vmem [shape: bf16[3,16], index: 1, kind: input, shape index: {}]
  %s2 = inlined_call_operand.vmem [shape: f32[3,1], index: 2, kind: input, shape index: {}]
  %s3 = inlined_call_operand.vmem [shape: f32[2,3,256], index: 3, kind: output, shape index: {}]
  %s4 = sld [smem:[#allocation0]]
  $region86: #{tpu_custom_call.1} parent=0
    _
  %s6 = ssub.s32 1, %s4
  %s7 = scalar_select 0, %s6, %s4
  $region1: #{tpu_custom_call.1} parent=0
    #allocation2 [shape = 'u8[32768]{0}', space=vmem, size = 0x8000, scoped, tag = 'input window, operand 0']
    #allocation3 [shape = 's32[2]{0}', space=sflag, size = 0x8, scoped, tag = 'scoped memory for tpu_custom_call.1']
    #allocation4 [shape = 'u8[8192]{0}', space=vmem, size = 0x2000, scoped, tag = 'output window, operand 0']
    %8 = vsyncpa [#allocation3], 0
    %s9 = scalar_lea.sflag [#allocation3], 1
    %10 = vsyncpa %s9, 0
    loop: start=0, step=1, limit=4
    $region2: #{tpu_custom_call.1} parent=1 // loop_pre_header
      _
    $region3: #{tpu_custom_call.1} parent=1 // loop_header
      %s12 = sphi 0, %s16
      %p13 = scmp.ge.s32.totalorder %s12, 4
      %s19 = sphi 0, %s31
      %s20 = sphi 0, %s27
      %s21 = sphi 0, %s19
      %s22 = sphi 0, %s20
      %s23 = sphi 0, %s21
      %s24 = sphi 0, %s22
      %s36 = sphi 0, %s38
      %s39 = sphi 0, %s36
      %s40 = sphi 0, %s39
      %s56 = sphi 0, %s40
      %s60 = sphi 0, %s60
      %s62 = sphi 0, %s60
      %s63 = sphi 0, %s62
      %s77 = sphi 0, %s63
      %s81 = sphi 0, %s81
      %s83 = sphi 0, %s81
      %s84 = sphi 0, %s83
      %s98 = sphi 0, %s84
      %s106 = sphi 0, %s108
      %s109 = sphi 0, %s106
      %s110 = sphi 0, %s109
      %s126 = sphi 0, %s110
    $region4: #{tpu_custom_call.1} parent=1 // loop_header_branch
      %15 = sbr.rel (%p13) target = $region8
    $region5: #{tpu_custom_call.1} parent=1 // loop_body
      %s17 = ssub.s32 %s12, 1
      %s18 = ssub.s32 %s12, 2
      %s25 = sadd.s32 1, %s20
      %p26 = scmp.ge.s32.totalorder %s25, 2
      %s27 = scalar_select %p26, 0, %s25
      %s28 = sadd.s32 1, %s19
      %s29 = scalar_select %p26, %s28, %s19
      %p30 = scmp.ge.s32.totalorder %s29, 1
      %s31 = scalar_select %p30, 0, %s29
      %s32 = ssub.s32 %s19, %s31
      %s33 = ssub.s32 %s20, %s27
      %s34 = sor.u32 %s32, %s33
      %p35 = scmp.eq.s32.totalorder %s34, 0
      %s37 = sadd.s32 %s36, 1
      %s38 = scalar_select %p35, %s36, %s37
      %p41 = pneg %p35
      %p42 = scmp.eq.s32.totalorder %s12, 1
      %p43 = por %p41, %p42
      %p44 = scmp.ne.s32.totalorder %s36, %s39
      %p45 = scmp.eq.s32.totalorder %s12, 0
      %p46 = por %p44, %p45
      %p47 = scmp.ne.s32.totalorder %s36, %s39
      %p48 = scmp.eq.s32.totalorder %s17, 1
      %p49 = por %p47, %p48
      %p50 = scmp.ne.s32.totalorder %s39, %s40
      %p51 = scmp.eq.s32.totalorder %s17, 0
      %p52 = por %p50, %p51
      %p53 = scmp.ne.s32.totalorder %s39, %s40
      %p54 = scmp.eq.s32.totalorder %s18, 1
      %p55 = por %p53, %p54
      %p57 = scmp.ne.s32.totalorder %s40, %s56
      %p58 = scmp.eq.s32.totalorder %s18, 0
      %p59 = por %p57, %p58
      %s61 = sadd.s32 %s60, 1
      %p64 = scmp.eq.s32.totalorder %s12, 1
      %p65 = scmp.ne.s32.totalorder %s60, %s62
      %p66 = scmp.eq.s32.totalorder %s12, 0
      %p67 = por %p65, %p66
      %p68 = scmp.ne.s32.totalorder %s60, %s62
      %p69 = scmp.eq.s32.totalorder %s17, 1
      %p70 = por %p68, %p69
      %p71 = scmp.ne.s32.totalorder %s62, %s63
      %p72 = scmp.eq.s32.totalorder %s17, 0
      %p73 = por %p71, %p72
      %p74 = scmp.ne.s32.totalorder %s62, %s63
      %p75 = scmp.eq.s32.totalorder %s18, 1
      %p76 = por %p74, %p75
      %p78 = scmp.ne.s32.totalorder %s63, %s77
      %p79 = scmp.eq.s32.totalorder %s18, 0
      %p80 = por %p78, %p79
      %s82 = sadd.s32 %s81, 1
      %p85 = scmp.eq.s32.totalorder %s12, 1
      %p86 = scmp.ne.s32.totalorder %s81, %s83
      %p87 = scmp.eq.s32.totalorder %s12, 0
      %p88 = por %p86, %p87
      %p89 = scmp.ne.s32.totalorder %s81, %s83
      %p90 = scmp.eq.s32.totalorder %s17, 1
      %p91 = por %p89, %p90
      %p92 = scmp.ne.s32.totalorder %s83, %s84
      %p93 = scmp.eq.s32.totalorder %s17, 0
      %p94 = por %p92, %p93
      %p95 = scmp.ne.s32.totalorder %s83, %s84
      %p96 = scmp.eq.s32.totalorder %s18, 1
      %p97 = por %p95, %p96
      %p99 = scmp.ne.s32.totalorder %s84, %s98
      %p100 = scmp.eq.s32.totalorder %s18, 0
      %p101 = por %p99, %p100
      %s102 = ssub.s32 %s19, %s31
      %s103 = ssub.s32 %s20, %s27
      %s104 = sor.u32 %s102, %s103
      %p105 = scmp.eq.s32.totalorder %s104, 0
      %s107 = sadd.s32 %s106, 1
      %s108 = scalar_select %p105, %s106, %s107
      %p111 = pneg %p105
      %p112 = scmp.eq.s32.totalorder %s12, 1
      %p113 = por %p111, %p112
      %p114 = scmp.ne.s32.totalorder %s106, %s109
      %p115 = scmp.eq.s32.totalorder %s12, 0
      %p116 = por %p114, %p115
      %p117 = scmp.ne.s32.totalorder %s106, %s109
      %p118 = scmp.eq.s32.totalorder %s17, 1
      %p119 = por %p117, %p118
      %p120 = scmp.ne.s32.totalorder %s109, %s110
      %p121 = scmp.eq.s32.totalorder %s17, 0
      %p122 = por %p120, %p121
      %p123 = scmp.ne.s32.totalorder %s109, %s110
      %p124 = scmp.eq.s32.totalorder %s18, 1
      %p125 = por %p123, %p124
      %p127 = scmp.ne.s32.totalorder %s110, %s126
      %p128 = scmp.eq.s32.totalorder %s18, 0
      %p129 = por %p127, %p128
      %p130 = scmp.le.s32.totalorder 1, %s12
      %p131 = scmp.lt.s32.totalorder %s12, 3
      %p132 = pnand %p130, %p131
      %p133 = pneg %p132
      // Predicated region
      $region9: #{tpu_custom_call.1} parent=5 // pred_check
        _
      $region10: #{tpu_custom_call.1} parent=5 // pred_check_branch
        %135 = sbr.rel (%p132) target = $region12
      $region11: #{tpu_custom_call.1} parent=5 // pred_region
        %s136 = ssub.s32 %s12, 1
        // Predicated region
        $region13: #{tpu_custom_call.1} parent=11 // pred_check
          %p137 = pneg %p73
        $region14: #{tpu_custom_call.1} parent=11 // pred_check_branch
          %139 = sbr.rel (%p137) target = $region16
        $region15: #{tpu_custom_call.1} parent=11 // pred_region
          _
        $region16: #{tpu_custom_call.1} parent=11 // pred_fallthru
          _
        // Predicated region
        $region17: #{tpu_custom_call.1} parent=11 // pred_check
          %p140 = pneg %p94
        $region18: #{tpu_custom_call.1} parent=11 // pred_check_branch
          %142 = sbr.rel (%p140) target = $region20
        $region19: #{tpu_custom_call.1} parent=11 // pred_region
          _
        $region20: #{tpu_custom_call.1} parent=11 // pred_fallthru
          _
      $region12: #{tpu_custom_call.1} parent=5 // pred_fallthru
        _
      %p143 = scmp.lt.s32.totalorder %s12, 2
      // Predicated region
      $region21: #{tpu_custom_call.1} parent=5 // pred_check
        %p144 = pneg %p143
      $region22: #{tpu_custom_call.1} parent=5 // pred_check_branch
        %146 = sbr.rel (%p144) target = $region24
      $region23: #{tpu_custom_call.1} parent=5 // pred_region
        // Predicated region
        $region25: #{tpu_custom_call.1} parent=23 // pred_check
          %p147 = pneg %p46
        $region26: #{tpu_custom_call.1} parent=23 // pred_check_branch
          %149 = sbr.rel (%p147) target = $region28
        $region27: #{tpu_custom_call.1} parent=23 // pred_region
          %s150 = sand.u32 %s36, 1
          %s151 = scalar_lea.sflag [#allocation3], %s150
          %s152 = sand.u32 %s36, 1
          %s153 = smul.addr %s152, 32
          %s154 = scalar_lea.vmem [#allocation2], %s153
          %s155 = smul.u32 2, %s19
          %s157 = ssub.s32 512, 512
          %158 = vsyncadd %s151, %s157
          %s159 = smul.addr %s155, 4
          %s160 = sadd.s32 %s20, %s159
          %s161 = smul.addr %s160, 128
          %s162 = scalar_lea.hbm %s0, %s161
          %s163 = sshll.u32 %s154, 4
          %s164 = int_to_ptr.vmem [resolvable:$true] %s163
          %169 = dma.hbm_to_vmem [thread:$0]  %s162, 512, %s164, %s151, 256, 128, 8
        $region28: #{tpu_custom_call.1} parent=23 // pred_fallthru
          _
      $region24: #{tpu_custom_call.1} parent=5 // pred_fallthru
        _
      %p170 = scmp.le.s32.totalorder 1, %s12
      %p171 = scmp.lt.s32.totalorder %s12, 3
      %p172 = pnand %p170, %p171
      %p173 = pneg %p172
      // Predicated region
      $region29: #{tpu_custom_call.1} parent=5 // pred_check
        _
      $region30: #{tpu_custom_call.1} parent=5 // pred_check_branch
        %175 = sbr.rel (%p172) target = $region32
      $region31: #{tpu_custom_call.1} parent=5 // pred_region
        %s176 = ssub.s32 %s12, 1
        %s177 = sand.u32 %s39, 1
        %s178 = scalar_lea.sflag [#allocation3], %s177
        %s179 = sand.u32 %s39, 1
        %s180 = smul.addr %s179, 32
        %s181 = scalar_lea.vmem [#allocation2], %s180
        // Predicated region
        $region33: #{tpu_custom_call.1} parent=31 // pred_check
          %p182 = pneg %p52
        $region34: #{tpu_custom_call.1} parent=31 // pred_check_branch
          %184 = sbr.rel (%p182) target = $region36
        $region35: #{tpu_custom_call.1} parent=31 // pred_region
          %185 = dma.done %s178, 512
        $region36: #{tpu_custom_call.1} parent=31 // pred_fallthru
          _
        %s186 = sand.u32 %s39, 1
        %s187 = scalar_lea.sflag [#allocation3], %s186
        %s188 = sand.u32 %s39, 1
        %s189 = smul.addr %s188, 32
        %s190 = scalar_lea.vmem [#allocation2], %s189
        %p191 = pneg %p52
        %p192 = pneg %p49
        %p193 = pneg %p73
        %p194 = pneg %p70
        %p195 = pneg %p94
        %p196 = pneg %p91
        %p197 = pneg %p122
        %p198 = pneg %p119
        %s199 = sand.u32 %s109, 1
        %s200 = sand.u32 %s109, 1
        %s201 = smul.addr %s200, 8
        %s202 = scalar_lea.vmem [#allocation4], %s201
        %s203 = smul.u32 2, %s21
        %s204 = smul.u32 2, %s21
        %v206 = vld [vmem:[%s2] sm:$0x7]
        %v207 = vld [vmem:[%s1] sm:$0x3]
        %v208 = vld [vmem:[%s181] sm:$0xff]
        %v209 = vld [vmem:[%s181 + $0x8] sm:$0xff]
        %v210 = vpack.c.bf16 %v209, %v208
        %212 = vset.pattern.permute.xlu0 0
        %213 = vperm.xlu0 %212, %v206
        %v214 = vpop.permute.xlu0 %213
        %vm216 = vcmask 130048
        %v218 = vsel %vm216, %v207, 0
        %220 = vmatprep.subr.bf16.mxu0 0
        %221 = vmatpush1.bf16.msra.mxu0 %v210
        %222 = vmatprep.subr.bf16.mxu0 0
        %223 = vmatpush1.bf16.msra.mxu0 0
        %224 = vmatprep.subr.bf16.mxu0 0
        %225 = vmatpush1.bf16.msra.mxu0 0
        %226 = vmatprep.subr.bf16.mxu0 0
        %227 = vmatpush1.bf16.msra.mxu0 0
        %228 = vmatprep.subr.bf16.mxu0 0
        %229 = vmatpush1.bf16.msra.mxu0 0
        %230 = vmatprep.subr.bf16.mxu0 0
        %231 = vmatpush1.bf16.msra.mxu0 0
        %232 = vmatprep.subr.bf16.mxu0 0
        %233 = vmatpush1.bf16.msra.mxu0 0
        %234 = vmatprep.subr.bf16.mxu0 0
        %235 = vmatpush1.bf16.msra.mxu0 0
        %236 = vmatprep.subr.bf16.mxu0 0
        %237 = vmatpush1.bf16.msra.mxu0 0
        %238 = vmatprep.subr.bf16.mxu0 0
        %239 = vmatpush1.bf16.msra.mxu0 0
        %240 = vmatprep.subr.bf16.mxu0 0
        %241 = vmatpush1.bf16.msra.mxu0 0
        %242 = vmatprep.subr.bf16.mxu0 0
        %243 = vmatpush1.bf16.msra.mxu0 0
        %244 = vmatprep.subr.bf16.mxu0 0
        %245 = vmatpush1.bf16.msra.mxu0 0
        %246 = vmatprep.subr.bf16.mxu0 0
        %247 = vmatpush1.bf16.msra.mxu0 0
        %248 = vmatprep.subr.bf16.mxu0 0
        %249 = vmatpush1.bf16.msra.mxu0 0
        %250 = vmatprep.subr.bf16.mxu0 0
        %251 = vmatpush1.bf16.msra.mxu0 0
        %252 = vmatprep.mubr.bf16.mxu0 0
        %253 = vmatmul.mubr.bf16.gmra.mrb[0].mxu0 %v218
        %v254 = vpop.f32.mrb[0].mxu0
        %v255 = vadd.f32 %v214, %v254
        %v256 = vpop.f32.mrb[0].mxu0
        %v257 = vpop.f32.mrb[0].mxu0
        %v258 = vpop.f32.mrb[0].mxu0
        %259 = vdwg.mxu0
        %260 = vst [vmem:[%s202] sm:$0x7] %v255
        %s261 = scalar_lea.vmem %s181, 16 [#allocation2]
        %v262 = vld [vmem:[%s261] sm:$0xff]
        %v263 = vld [vmem:[%s261 + $0x8] sm:$0xff]
        %v264 = vpack.c.bf16 %v263, %v262
        %265 = vmatprep.subr.bf16.mxu0 0
        %266 = vmatpush1.bf16.msra.mxu0 %v264
        %267 = vmatprep.subr.bf16.mxu0 0
        %268 = vmatpush1.bf16.msra.mxu0 0
        %269 = vmatprep.subr.bf16.mxu0 0
        %270 = vmatpush1.bf16.msra.mxu0 0
        %271 = vmatprep.subr.bf16.mxu0 0
        %272 = vmatpush1.bf16.msra.mxu0 0
        %273 = vmatprep.subr.bf16.mxu0 0
        %274 = vmatpush1.bf16.msra.mxu0 0
        %275 = vmatprep.subr.bf16.mxu0 0
        %276 = vmatpush1.bf16.msra.mxu0 0
        %277 = vmatprep.subr.bf16.mxu0 0
        %278 = vmatpush1.bf16.msra.mxu0 0
        %279 = vmatprep.subr.bf16.mxu0 0
        %280 = vmatpush1.bf16.msra.mxu0 0
        %281 = vmatprep.subr.bf16.mxu0 0
        %282 = vmatpush1.bf16.msra.mxu0 0
        %283 = vmatprep.subr.bf16.mxu0 0
        %284 = vmatpush1.bf16.msra.mxu0 0
        %285 = vmatprep.subr.bf16.mxu0 0
        %286 = vmatpush1.bf16.msra.mxu0 0
        %287 = vmatprep.subr.bf16.mxu0 0
        %288 = vmatpush1.bf16.msra.mxu0 0
        %289 = vmatprep.subr.bf16.mxu0 0
        %290 = vmatpush1.bf16.msra.mxu0 0
        %291 = vmatprep.subr.bf16.mxu0 0
        %292 = vmatpush1.bf16.msra.mxu0 0
        %293 = vmatprep.subr.bf16.mxu0 0
        %294 = vmatpush1.bf16.msra.mxu0 0
        %295 = vmatprep.subr.bf16.mxu0 0
        %296 = vmatpush1.bf16.msra.mxu0 0
        %297 = vmatprep.mubr.bf16.mxu0 0
        %298 = vmatmul.mubr.bf16.gmra.mrb[0].mxu0 %v218
        %v299 = vpop.f32.mrb[0].mxu0
        %v300 = vadd.f32 %v214, %v299
        %v301 = vpop.f32.mrb[0].mxu0
        %v302 = vpop.f32.mrb[0].mxu0
        %v303 = vpop.f32.mrb[0].mxu0
        %304 = vdwg.mxu0
        %s305 = scalar_lea.vmem %s202, 4 [#allocation4]
        %306 = vst [vmem:[%s305] sm:$0x7] %v300
        %s307 = sand.u32 %s109, 1
        %s308 = sand.u32 %s109, 1
        %s309 = smul.addr %s308, 8
        %s310 = scalar_lea.vmem [#allocation4], %s309
        // Predicated region
        $region37: #{tpu_custom_call.1} parent=31 // pred_check
          %p311 = pneg %p119
        $region38: #{tpu_custom_call.1} parent=31 // pred_check_branch
          %313 = sbr.rel (%p311) target = $region40
        $region39: #{tpu_custom_call.1} parent=31 // pred_region
          %s314 = smul.u32 2, %s21
          %s315 = smul.addr %s314, 2
          %s316 = sadd.s32 %s22, %s315
          %s317 = smul.addr %s316, 4
          %s318 = scalar_lea.vmem %s3, %s317
          // Predicated region
          $region41: #{tpu_custom_call.1} parent=39 // pred_check
            _
          $region42: #{tpu_custom_call.1} parent=39 // pred_check_branch
            %320 = sbr.rel (0) target = $region44
          $region43: #{tpu_custom_call.1} parent=39 // pred_region
            // Predicated region
            $region45: #{tpu_custom_call.1} parent=43 // pred_check
              _
            $region46: #{tpu_custom_call.1} parent=43 // pred_check_branch
              %322 = sbr.rel target = $region48
            $region47: #{tpu_custom_call.1} parent=43 // pred_region
              // Predicated region
              $region60: #{tpu_custom_call.1} parent=47 // pred_check
                _
              $region61: #{tpu_custom_call.1} parent=47 // pred_check_branch
                %339 = sbr.rel (0) target = $region63
              $region62: #{tpu_custom_call.1} parent=47 // pred_region
                loop: start=0, step=1, limit=1
                $region64: #{tpu_custom_call.1} parent=62 // loop_pre_header
                  _
                $region65: #{tpu_custom_call.1} parent=62 // loop_header
                  %s341 = sphi 0, %s345
                  %p342 = scmp.ge.s32.totalorder %s341, 1
                  %s346 = sphi %s310, %s310
                  %s347 = sphi %s318, %s318
                $region66: #{tpu_custom_call.1} parent=62 // loop_header_branch
                  %344 = sbr.rel (%p342) target = $region70
                $region67: #{tpu_custom_call.1} parent=62 // loop_body
                  _
                $region68: #{tpu_custom_call.1} parent=62 // loop_footer
                  %s345 = sadd.s32 1, %s341
                $region69: #{tpu_custom_call.1} parent=62 // loop_footer_branch
                  %340 = sbr.rel target = $region65
                $region70: #{tpu_custom_call.1} parent=62 // loop_exit
                  _
                loop: start=0, step=1, limit=1
                $region71: #{tpu_custom_call.1} parent=62 // loop_pre_header
                  _
                $region72: #{tpu_custom_call.1} parent=62 // loop_header
                  %s350 = sphi 0, %s354
                  %p351 = scmp.ge.s32.totalorder %s350, 1
                  %s355 = sphi %s310, %s310
                  %s356 = sphi %s318, %s318
                $region73: #{tpu_custom_call.1} parent=62 // loop_header_branch
                  %353 = sbr.rel (%p351) target = $region77
                $region74: #{tpu_custom_call.1} parent=62 // loop_body
                  %v357 = vld [vmem:[%s355] sm:$0xf]
                  %358 = vst [vmem:[%s356] sm:$0xf] %v357
                  %v359 = vld [vmem:[%s355 + $0x4] sm:$0xf]
                  %360 = vst [vmem:[%s356 + $0x8] sm:$0xf] %v359
                $region75: #{tpu_custom_call.1} parent=62 // loop_footer
                  %s354 = sadd.s32 1, %s350
                $region76: #{tpu_custom_call.1} parent=62 // loop_footer_branch
                  %349 = sbr.rel target = $region72
                $region77: #{tpu_custom_call.1} parent=62 // loop_exit
                  _
              $region63: #{tpu_custom_call.1} parent=47 // pred_fallthru
                _
            $region48: #{tpu_custom_call.1} parent=43 // pred_fallthru
              _
            // Predicated region
            $region49: #{tpu_custom_call.1} parent=43 // pred_check
              _
            $region50: #{tpu_custom_call.1} parent=43 // pred_check_branch
              %324 = sbr.rel (0) target = $region52
            $region51: #{tpu_custom_call.1} parent=43 // pred_region
              loop: start=0, step=1, limit=1
              $region53: #{tpu_custom_call.1} parent=51 // loop_pre_header
                _
              $region54: #{tpu_custom_call.1} parent=51 // loop_header
                %s327 = sphi 0, %s331
                %p328 = scmp.ge.s32.totalorder %s327, 1
                %s332 = sphi %s310, %s310
                %s333 = sphi %s318, %s318
              $region55: #{tpu_custom_call.1} parent=51 // loop_header_branch
                %330 = sbr.rel (%p328) target = $region59
              $region56: #{tpu_custom_call.1} parent=51 // loop_body
                %v334 = vld [vmem:[%s332] sm:$0xf]
                %335 = vst [vmem:[%s333] sm:$0xf] %v334
                %v336 = vld [vmem:[%s332 + $0x4] sm:$0xf]
                %337 = vst [vmem:[%s333 + $0x8] sm:$0xf] %v336
              $region57: #{tpu_custom_call.1} parent=51 // loop_footer
                %s331 = sadd.s32 1, %s327
              $region58: #{tpu_custom_call.1} parent=51 // loop_footer_branch
                %326 = sbr.rel target = $region54
              $region59: #{tpu_custom_call.1} parent=51 // loop_exit
                _
            $region52: #{tpu_custom_call.1} parent=43 // pred_fallthru
              _
          $region44: #{tpu_custom_call.1} parent=39 // pred_fallthru
            _
          %361 = vnop
        $region40: #{tpu_custom_call.1} parent=31 // pred_fallthru
          _
      $region32: #{tpu_custom_call.1} parent=5 // pred_fallthru
        _
      %p362 = scmp.le.s32.totalorder 2, %s12
      // Predicated region
      $region78: #{tpu_custom_call.1} parent=5 // pred_check
        %p363 = pneg %p362
      $region79: #{tpu_custom_call.1} parent=5 // pred_check_branch
        %365 = sbr.rel (%p363) target = $region81
      $region80: #{tpu_custom_call.1} parent=5 // pred_region
        %s366 = ssub.s32 %s12, 2
        // Predicated region
        $region82: #{tpu_custom_call.1} parent=80 // pred_check
          %p367 = pneg %p125
        $region83: #{tpu_custom_call.1} parent=80 // pred_check_branch
          %369 = sbr.rel (%p367) target = $region85
        $region84: #{tpu_custom_call.1} parent=80 // pred_region
          %s370 = sand.u32 %s110, 1
          %s371 = sand.u32 %s110, 1
          %s372 = smul.addr %s371, 8
          %s373 = scalar_lea.vmem [#allocation4], %s372
        $region85: #{tpu_custom_call.1} parent=80 // pred_fallthru
          _
      $region81: #{tpu_custom_call.1} parent=5 // pred_fallthru
        _
    $region6: #{tpu_custom_call.1} parent=1 // loop_footer
      %s16 = sadd.s32 1, %s12
    $region7: #{tpu_custom_call.1} parent=1 // loop_footer_branch
      %11 = sbr.rel target = $region3
    $region8: #{tpu_custom_call.1} parent=1 // loop_exit
      _
    %374 = vsyncpa [#allocation3], 1
    %s375 = scalar_lea.sflag [#allocation3], 1
    %376 = vsyncpa %s375, 1

</llo_original>
